<compile_context>
chip_gen: v7x
topology: tpu7x:2x2x1
jax: 0.10.0
libtpu: 0.0.40
codegen_flags: <defaults>
</compile_context>

<pallas_src>
import functools

import jax
import jax.numpy as jnp
from jax.experimental import pallas as pl
from jax.experimental.pallas import tpu as pltpu

ALPHA = 0.5
BETA = 0.5
GAMMA = 1
SMOOTH = 1.0

LANES = 128
SUBLANES = 8
DEFAULT_BLOCK_ROWS = 4096  # (4096, 128) f32 = 2 MB per input per block


def _round_up(x, m):
    return (x + m - 1) // m * m


def _focal_tversky_partial_kernel(rem_ref, x_ref, t_ref, tp_ref, w_ref, *,
                                  block_rows):
    """Per-grid-step partial sums (no carried state -> parallel grid axis).

    rem_ref : (1,) SMEM scalar-prefetch: # of valid elements in the LAST block
    x_ref   : (block_rows, 128) logits tile
    t_ref   : (block_rows, 128) targets tile
    tp_ref  : (1, 8, 128) per-step partial sum of p*t
    w_ref   : (1, 8, 128) per-step partial sum of ALPHA*p + BETA*t
    """
    i = pl.program_id(0)
    nsteps = pl.num_programs(0)
    groups = block_rows // SUBLANES

    x = x_ref[...].astype(jnp.float32)
    t = t_ref[...].astype(jnp.float32)
    # sigmoid(x) == 0.5*tanh(0.5*x) + 0.5  (one EUP op + cheap VPU mul/add).
    p = 0.5 * jnp.tanh(0.5 * x) + 0.5

    def _reduce(v):
        # Leading-axis sum over (groups, 8, 128): pure vreg adds on the VPU,
        # no cross-lane / cross-sublane traffic.
        return jnp.sum(v.reshape(groups, SUBLANES, LANES), axis=0)

    @pl.when(i < nsteps - 1)
    def _full_tile():
        tp_ref[0] = _reduce(p * t)
        w_ref[0] = _reduce(ALPHA * p + BETA * t)

    @pl.when(i == nsteps - 1)
    def _tail_tile():
        # Only the last block can contain lane padding or partial-block
        # (unspecified) data -> mask BOTH p and t before any sum.
        rows_i = jax.lax.broadcasted_iota(jnp.int32, (block_rows, LANES), 0)
        cols_i = jax.lax.broadcasted_iota(jnp.int32, (block_rows, LANES), 1)
        valid = rows_i * LANES + cols_i < rem_ref[0]
        pm = jnp.where(valid, p, 0.0)
        tm = jnp.where(valid, t, 0.0)
        tp_ref[0] = _reduce(pm * tm)
        w_ref[0] = _reduce(ALPHA * pm + BETA * tm)


@jax.jit
def focal_tversky_loss(inputs, targets):
    """inputs: logits of any shape; targets: same shape (binary mask)."""
    x = jnp.ravel(inputs)  # native dtype kept; cast happens in-kernel
    t = jnp.ravel(targets)
    n = x.shape[0]

    rows = pl.cdiv(n, LANES)
    lane_pad = rows * LANES - n
    if lane_pad:  # only for ragged n; no-op (no copy) for the aligned case
        x = jnp.pad(x, (0, lane_pad))
        t = jnp.pad(t, (0, lane_pad))
    x2 = x.reshape(rows, LANES)
    t2 = t.reshape(rows, LANES)

    # Multiple of 32 keeps the block tile-legal for f32/bf16/int8/bool inputs.
    block_rows = min(DEFAULT_BLOCK_ROWS, _round_up(rows, 32))
    nsteps = pl.cdiv(rows, block_rows)

    # Valid element count inside the last (possibly partial) block; always
    # fits int32 regardless of total tensor size (avoids int32-overflow trap).
    rem = n - (nsteps - 1) * block_rows * LANES
    rem_arr = jnp.array([rem], dtype=jnp.int32)

    kernel = functools.partial(_focal_tversky_partial_kernel,
                               block_rows=block_rows)

    tp_part, w_part = pl.pallas_call(
        kernel,
        out_shape=(
            jax.ShapeDtypeStruct((nsteps, SUBLANES, LANES), jnp.float32),
            jax.ShapeDtypeStruct((nsteps, SUBLANES, LANES), jnp.float32),
        ),
        grid_spec=pltpu.PrefetchScalarGridSpec(
            num_scalar_prefetch=1,
            grid=(nsteps,),
            in_specs=[
                pl.BlockSpec((block_rows, LANES), lambda i, rem: (i, 0)),
                pl.BlockSpec((block_rows, LANES), lambda i, rem: (i, 0)),
            ],
            out_specs=[
                pl.BlockSpec((1, SUBLANES, LANES), lambda i, rem: (i, 0, 0)),
                pl.BlockSpec((1, SUBLANES, LANES), lambda i, rem: (i, 0, 0)),
            ],
        ),
        compiler_params=pltpu.CompilerParams(
            dimension_semantics=("parallel",),
            vmem_limit_bytes=48 * 1024 * 1024,
        ),
    )(rem_arr, x2, t2)

    # Scalar epilogue in JAX (tiny): tp = sum(p*t), w = sum(alpha*p + beta*t).
    tp = jnp.sum(tp_part)
    w = jnp.sum(w_part)
    denom = tp * (1.0 - ALPHA - BETA) + w + SMOOTH
    tversky = (tp + SMOOTH) / denom
    return (1.0 - tversky) ** GAMMA


def _reference(inputs, targets):
    p = jax.nn.sigmoid(jnp.ravel(inputs).astype(jnp.float32))
    t = jnp.ravel(targets).astype(jnp.float32)
    tp = jnp.sum(p * t)
    fp = jnp.sum((1.0 - t) * p)
    fn = jnp.sum(t * (1.0 - p))
    tversky = (tp + SMOOTH) / (tp + ALPHA * fp + BETA * fn + SMOOTH)
    return (1.0 - tversky) ** GAMMA


if __name__ == "__main__":
    key = jax.random.PRNGKey(0)
    k1, k2, k3, k4 = jax.random.split(key, 4)

    # NCHW logits and binary targets (lane-aligned case: zero wrapper copies).
    x = jax.random.normal(k1, (2, 4, 16, 16), dtype=jnp.float32)
    y = jax.random.bernoulli(k2, 0.3, (2, 4, 16, 16)).astype(jnp.float32)
    loss = jax.block_until_ready(focal_tversky_loss(x, y))
    ref = _reference(x, y)
    assert jnp.allclose(loss, ref, rtol=1e-4, atol=1e-5), (loss, ref)

    # Ragged case (exercises the in-kernel last-block mask for p AND t).
    x2 = jax.random.normal(k3, (1, 1, 13, 17), dtype=jnp.float32)
    y2 = jax.random.bernoulli(k4, 0.4, (1, 1, 13, 17)).astype(jnp.float32)
    loss2 = jax.block_until_ready(focal_tversky_loss(x2, y2))
    ref2 = _reference(x2, y2)
    assert jnp.allclose(loss2, ref2, rtol=1e-4, atol=1e-5), (loss2, ref2)

    print("KERNEL_OK")
</pallas_src>

<mosaic_0001>
module attributes {stable_mosaic.version = 11 : i64} {
  func.func @_focal_tversky_partial_kernel(%arg0: i32, %arg1: memref<1xi32, #tpu.memory_space<smem>>, %arg2: memref<32x128xf32, #tpu.memory_space<vmem>>, %arg3: memref<32x128xf32, #tpu.memory_space<vmem>>, %arg4: memref<1x8x128xf32, #tpu.memory_space<vmem>>, %arg5: memref<1x8x128xf32, #tpu.memory_space<vmem>>) attributes {dimension_semantics = [#tpu.dimension_semantics<parallel>], iteration_bounds = array<i64: 1>, scalar_prefetch = 1 : i64, scratch_operands = 0 : i64, tpu.core_type = #tpu.core_type<tc>, window_params = [{transform_indices = @transform_0, window_bounds = array<i64: 32, 128>}, {transform_indices = @transform_1, window_bounds = array<i64: 32, 128>}, {transform_indices = @transform_2, window_bounds = array<i64: 1, 8, 128>}, {transform_indices = @transform_3, window_bounds = array<i64: 1, 8, 128>}]} {
    %c0 = arith.constant 0 : index
    %c0_0 = arith.constant 0 : index
    %0 = vector.load %arg2[%c0, %c0_0] : memref<32x128xf32, #tpu.memory_space<vmem>>, vector<32x128xf32>
    %c0_1 = arith.constant 0 : index
    %c0_2 = arith.constant 0 : index
    %1 = vector.load %arg3[%c0_1, %c0_2] : memref<32x128xf32, #tpu.memory_space<vmem>>, vector<32x128xf32>
    %cst = arith.constant 5.000000e-01 : f32
    %2 = vector.broadcast %cst : f32 to vector<32x128xf32>
    %3 = arith.mulf %2, %0 : vector<32x128xf32>
    %4 = math.tanh %3 : vector<32x128xf32>
    %cst_3 = arith.constant 5.000000e-01 : f32
    %5 = vector.broadcast %cst_3 : f32 to vector<32x128xf32>
    %6 = arith.mulf %5, %4 : vector<32x128xf32>
    %cst_4 = arith.constant 5.000000e-01 : f32
    %7 = vector.broadcast %cst_4 : f32 to vector<32x128xf32>
    %8 = arith.addf %6, %7 : vector<32x128xf32>
    %c0_i32 = arith.constant 0 : i32
    %9 = arith.cmpi slt, %arg0, %c0_i32 : i32
    %10 = arith.extui %9 : i1 to i32
    %c0_i32_5 = arith.constant 0 : i32
    %11 = arith.cmpi ne, %10, %c0_i32_5 : i32
    scf.if %11 {
      %15 = arith.mulf %8, %1 : vector<32x128xf32>
      %16 = vector.shape_cast %15 : vector<32x128xf32> to vector<4x8x128xf32>
      %cst_8 = arith.constant dense<0.000000e+00> : vector<8x128xf32>
      %17 = vector.multi_reduction <add>, %16, %cst_8 [0] : vector<4x8x128xf32> to vector<8x128xf32>
      %c0_9 = arith.constant 0 : index
      %c0_10 = arith.constant 0 : index
      %c0_11 = arith.constant 0 : index
      %18 = vector.load %arg4[%c0_9, %c0_10, %c0_11] : memref<1x8x128xf32, #tpu.memory_space<vmem>>, vector<1x8x128xf32>
      %19 = vector.shape_cast %18 : vector<1x8x128xf32> to vector<8x128xf32>
      %20 = vector.shape_cast %17 : vector<8x128xf32> to vector<1x8x128xf32>
      tpu.vector_store %arg4[%c0_9, %c0_10, %c0_11], %20 {strides = array<i32>} : memref<1x8x128xf32, #tpu.memory_space<vmem>>, vector<1x8x128xf32>,
      %cst_12 = arith.constant 5.000000e-01 : f32
      %21 = vector.broadcast %cst_12 : f32 to vector<32x128xf32>
      %22 = arith.mulf %21, %8 : vector<32x128xf32>
      %cst_13 = arith.constant 5.000000e-01 : f32
      %23 = vector.broadcast %cst_13 : f32 to vector<32x128xf32>
      %24 = arith.mulf %23, %1 : vector<32x128xf32>
      %25 = arith.addf %22, %24 : vector<32x128xf32>
      %26 = vector.shape_cast %25 : vector<32x128xf32> to vector<4x8x128xf32>
      %cst_14 = arith.constant dense<0.000000e+00> : vector<8x128xf32>
      %27 = vector.multi_reduction <add>, %26, %cst_14 [0] : vector<4x8x128xf32> to vector<8x128xf32>
      %c0_15 = arith.constant 0 : index
      %c0_16 = arith.constant 0 : index
      %c0_17 = arith.constant 0 : index
      %28 = vector.load %arg5[%c0_15, %c0_16, %c0_17] : memref<1x8x128xf32, #tpu.memory_space<vmem>>, vector<1x8x128xf32>
      %29 = vector.shape_cast %28 : vector<1x8x128xf32> to vector<8x128xf32>
      %30 = vector.shape_cast %27 : vector<8x128xf32> to vector<1x8x128xf32>
      tpu.vector_store %arg5[%c0_15, %c0_16, %c0_17], %30 {strides = array<i32>} : memref<1x8x128xf32, #tpu.memory_space<vmem>>, vector<1x8x128xf32>,
    } else {
    }
    %c0_i32_6 = arith.constant 0 : i32
    %12 = arith.cmpi eq, %arg0, %c0_i32_6 : i32
    %13 = arith.extui %12 : i1 to i32
    %c0_i32_7 = arith.constant 0 : i32
    %14 = arith.cmpi ne, %13, %c0_i32_7 : i32
    scf.if %14 {
      %15 = tpu.iota {dimensions = array<i32: 0>} : vector<32x128xi32>
      %16 = tpu.iota {dimensions = array<i32: 1>} : vector<32x128xi32>
      %c128_i32 = arith.constant 128 : i32
      %17 = vector.broadcast %c128_i32 : i32 to vector<32x128xi32>
      %18 = arith.muli %15, %17 : vector<32x128xi32>
      %19 = arith.addi %18, %16 : vector<32x128xi32>
      %c0_8 = arith.constant 0 : index
      %20 = memref.load %arg1[%c0_8] : memref<1xi32, #tpu.memory_space<smem>>
      %21 = vector.broadcast %20 : i32 to vector<32x128xi32>
      %22 = arith.cmpi slt, %19, %21 : vector<32x128xi32>
      %cst_9 = arith.constant 0.000000e+00 : f32
      %23 = vector.broadcast %cst_9 : f32 to vector<32x128xf32>
      %24 = arith.select %22, %8, %23 : vector<32x128xi1>, vector<32x128xf32>
      %cst_10 = arith.constant 0.000000e+00 : f32
      %25 = vector.broadcast %cst_10 : f32 to vector<32x128xf32>
      %26 = arith.select %22, %1, %25 : vector<32x128xi1>, vector<32x128xf32>
      %27 = arith.mulf %24, %26 : vector<32x128xf32>
      %28 = vector.shape_cast %27 : vector<32x128xf32> to vector<4x8x128xf32>
      %cst_11 = arith.constant dense<0.000000e+00> : vector<8x128xf32>
      %29 = vector.multi_reduction <add>, %28, %cst_11 [0] : vector<4x8x128xf32> to vector<8x128xf32>
      %c0_12 = arith.constant 0 : index
      %c0_13 = arith.constant 0 : index
      %c0_14 = arith.constant 0 : index
      %30 = vector.load %arg4[%c0_12, %c0_13, %c0_14] : memref<1x8x128xf32, #tpu.memory_space<vmem>>, vector<1x8x128xf32>
      %31 = vector.shape_cast %30 : vector<1x8x128xf32> to vector<8x128xf32>
      %32 = vector.shape_cast %29 : vector<8x128xf32> to vector<1x8x128xf32>
      tpu.vector_store %arg4[%c0_12, %c0_13, %c0_14], %32 {strides = array<i32>} : memref<1x8x128xf32, #tpu.memory_space<vmem>>, vector<1x8x128xf32>,
      %cst_15 = arith.constant 5.000000e-01 : f32
      %33 = vector.broadcast %cst_15 : f32 to vector<32x128xf32>
      %34 = arith.mulf %33, %24 : vector<32x128xf32>
      %cst_16 = arith.constant 5.000000e-01 : f32
      %35 = vector.broadcast %cst_16 : f32 to vector<32x128xf32>
      %36 = arith.mulf %35, %26 : vector<32x128xf32>
      %37 = arith.addf %34, %36 : vector<32x128xf32>
      %38 = vector.shape_cast %37 : vector<32x128xf32> to vector<4x8x128xf32>
      %cst_17 = arith.constant dense<0.000000e+00> : vector<8x128xf32>
      %39 = vector.multi_reduction <add>, %38, %cst_17 [0] : vector<4x8x128xf32> to vector<8x128xf32>
      %c0_18 = arith.constant 0 : index
      %c0_19 = arith.constant 0 : index
      %c0_20 = arith.constant 0 : index
      %40 = vector.load %arg5[%c0_18, %c0_19, %c0_20] : memref<1x8x128xf32, #tpu.memory_space<vmem>>, vector<1x8x128xf32>
      %41 = vector.shape_cast %40 : vector<1x8x128xf32> to vector<8x128xf32>
      %42 = vector.shape_cast %39 : vector<8x128xf32> to vector<1x8x128xf32>
      tpu.vector_store %arg5[%c0_18, %c0_19, %c0_20], %42 {strides = array<i32>} : memref<1x8x128xf32, #tpu.memory_space<vmem>>, vector<1x8x128xf32>,
    } else {
    }
    return
  }
  func.func @transform_0(%arg0: i32, %arg1: memref<1xi32, #tpu.memory_space<smem>>) -> (i32, i32) {
    %c0_i32 = arith.constant 0 : i32
    %c0_i32_0 = arith.constant 0 : i32
    return %arg0, %c0_i32 : i32, i32
  }
  func.func @transform_1(%arg0: i32, %arg1: memref<1xi32, #tpu.memory_space<smem>>) -> (i32, i32) {
    %c0_i32 = arith.constant 0 : i32
    %c0_i32_0 = arith.constant 0 : i32
    return %arg0, %c0_i32 : i32, i32
  }
  func.func @transform_2(%arg0: i32, %arg1: memref<1xi32, #tpu.memory_space<smem>>) -> (i32, i32, i32) {
    %c0_i32 = arith.constant 0 : i32
    %c0_i32_0 = arith.constant 0 : i32
    %c0_i32_1 = arith.constant 0 : i32
    return %arg0, %c0_i32, %c0_i32_0 : i32, i32, i32
  }
  func.func @transform_3(%arg0: i32, %arg1: memref<1xi32, #tpu.memory_space<smem>>) -> (i32, i32, i32) {
    %c0_i32 = arith.constant 0 : i32
    %c0_i32_0 = arith.constant 0 : i32
    %c0_i32_1 = arith.constant 0 : i32
    return %arg0, %c0_i32, %c0_i32_0 : i32, i32, i32
  }
}

</mosaic_0001>

<llo_original>
// kernel: focal_tversky_loss.1
$region0: #{focal_tversky_loss.1}
  #allocation0 [shape = 'u32[]', space=smem, size = 0x4, offset = 0x4, fixed_abs, tag = 'smem constant byte address 0x4 - core index']
  #allocation1 [shape = 'u32[144,128]{1,0:T(1,128)}', space=vmem, size = 0x12000, scoped, tag = 'internal scratch']
  #allocation2 [shape = 's32[1]{0}', space=sflag, size = 0x4, scoped, tag = 'scoped memory for focal_tversky_loss.1']
  #allocation3 [shape = 's32[1]{0:T(128)S(6)}', space=smem, size = 0x200, scoped, tag = 'prefetched SMEM operand 0']
  %s0 = inlined_call_operand.<no memory space> [shape: s32[1], index: 0, kind: input, shape index: {}]
  %s1 = inlined_call_operand.vmem [shape: f32[16,128], index: 1, kind: input, shape index: {}]
  %s2 = inlined_call_operand.vmem [shape: f32[16,128], index: 2, kind: input, shape index: {}]
  %s3 = inlined_call_operand.vmem [shape: f32[1,8,128], index: 3, kind: output, shape index: {0}]
  %s4 = inlined_call_operand.vmem [shape: f32[1,8,128], index: 4, kind: output, shape index: {1}]
  %5 = xla_tuple %s3, %s4
  %s6 = sld [smem:[#allocation0]]
  $region34: #{focal_tversky_loss.1} parent=0
    _
  %s8 = ssub.s32 1, %s6
  %s9 = scalar_select 0, %s8, %s6
  %10 = sst [smem:[#allocation3]] %s0
  // Predicated region
  $region2: #{focal_tversky_loss.1} parent=0 // pred_check
    _
  $region3: #{focal_tversky_loss.1} parent=0 // pred_check_branch
    %12 = sbr.rel (0) target = $region5
  $region4: #{focal_tversky_loss.1} parent=0 // pred_region
    _
  $region5: #{focal_tversky_loss.1} parent=0 // pred_fallthru
    _
  // Predicated region
  $region6: #{focal_tversky_loss.1} parent=0 // pred_check
    _
  $region7: #{focal_tversky_loss.1} parent=0 // pred_check_branch
    %14 = sbr.rel (0) target = $region9
  $region8: #{focal_tversky_loss.1} parent=0 // pred_region
    _
  $region9: #{focal_tversky_loss.1} parent=0 // pred_fallthru
    _
  %v15 = vld [vmem:[%s1] sm:$0xff]
  %v16 = vld [vmem:[%s1 + $0x8] sm:$0xff]
  %v17 = vld [vmem:[%s1 + $0x10] sm:$0xff]
  %v18 = vld [vmem:[%s1 + $0x18] sm:$0xff]
  %v19 = vld [vmem:[%s2] sm:$0xff]
  %v20 = vld [vmem:[%s2 + $0x8] sm:$0xff]
  %v21 = vld [vmem:[%s2 + $0x10] sm:$0xff]
  %v22 = vld [vmem:[%s2 + $0x18] sm:$0xff]
  %v23 = vmul.f32 %v15, 0.5
  %v24 = vmul.f32 %v16, 0.5
  %v25 = vmul.f32 %v17, 0.5
  %v26 = vmul.f32 %v18, 0.5
  %v27 = vtanh.pop %v23
  %v28 = vtanh.pop %v24
  %v29 = vtanh.pop %v25
  %v30 = vtanh.pop %v26
  %v31 = vmul.f32 %v27, 0.5
  %v32 = vmul.f32 %v28, 0.5
  %v33 = vmul.f32 %v29, 0.5
  %v34 = vmul.f32 %v30, 0.5
  %v35 = vadd.f32 %v31, 0.5
  %v36 = vadd.f32 %v32, 0.5
  %v37 = vadd.f32 %v33, 0.5
  %v38 = vadd.f32 %v34, 0.5
  %p39 = scmp.lt.s32.totalorder 0, 0
  // Predicated region
  $region10: #{focal_tversky_loss.1} parent=0 // pred_check
    %p40 = pneg %p39
  $region11: #{focal_tversky_loss.1} parent=0 // pred_check_branch
    %42 = sbr.rel (%p40) target = $region13
  $region12: #{focal_tversky_loss.1} parent=0 // pred_region
    %v43 = vmul.f32 %v35, %v19
    %v44 = vmul.f32 %v36, %v20
    %v45 = vmul.f32 %v37, %v21
    %v46 = vmul.f32 %v38, %v22
    %v47 = vadd.f32 %v43, %v44
    %v48 = vadd.f32 %v47, %v45
    %v49 = vadd.f32 %v48, %v46
    %50 = vst [vmem:[%s3] sm:$0xff] %v49
    %v51 = vmul.f32 %v35, 0.5
    %v52 = vmul.f32 %v36, 0.5
    %v53 = vmul.f32 %v37, 0.5
    %v54 = vmul.f32 %v38, 0.5
    %v55 = vmul.f32 %v19, 0.5
    %v56 = vmul.f32 %v20, 0.5
    %v57 = vmul.f32 %v21, 0.5
    %v58 = vmul.f32 %v22, 0.5
    %v59 = vadd.f32 %v51, %v55
    %v60 = vadd.f32 %v52, %v56
    %v61 = vadd.f32 %v53, %v57
    %v62 = vadd.f32 %v54, %v58
    %v63 = vadd.f32 %v59, %v60
    %v64 = vadd.f32 %v63, %v61
    %v65 = vadd.f32 %v64, %v62
    %66 = vst [vmem:[%s4] sm:$0xff] %v65
  $region13: #{focal_tversky_loss.1} parent=0 // pred_fallthru
    _
  %p67 = scmp.eq.s32.totalorder 0, 0
  // Predicated region
  $region14: #{focal_tversky_loss.1} parent=0 // pred_check
    %p68 = pneg %p67
  $region15: #{focal_tversky_loss.1} parent=0 // pred_check_branch
    %70 = sbr.rel (%p68) target = $region17
  $region16: #{focal_tversky_loss.1} parent=0 // pred_region
    %v71 = vlaneseq
    %v72 = vshrl.u32 %v71, 7
    %v73 = vadd.s32 %v72, 8
    %v74 = vadd.s32 %v72, 16
    %v75 = vadd.s32 %v72, 24
    %v76 = vlaneseq
    %v77 = vand.u32 %v76, 127
    %v78 = vmul.u32 %v72, 128
    %v79 = vmul.u32 %v73, 128
    %v80 = vmul.u32 %v74, 128
    %v81 = vmul.u32 %v75, 128
    %v82 = vadd.s32 %v78, %v77
    %v83 = vadd.s32 %v79, %v77
    %v84 = vadd.s32 %v80, %v77
    %v85 = vadd.s32 %v81, %v77
    %s86 = sld [smem:[#allocation3]]
    %v87 = vstv %s86
    %vm88 = vcmp.lt.s32.totalorder %v82, %v87
    %vm89 = vcmp.lt.s32.totalorder %v83, %v87
    %vm90 = vcmp.lt.s32.totalorder %v84, %v87
    %vm91 = vcmp.lt.s32.totalorder %v85, %v87
    %v92 = vsel %vm88, %v35, 0.0
    %v93 = vsel %vm89, %v36, 0.0
    %v94 = vsel %vm90, %v37, 0.0
    %v95 = vsel %vm91, %v38, 0.0
    %v96 = vsel %vm88, %v19, 0.0
    %v97 = vsel %vm89, %v20, 0.0
    %v98 = vsel %vm90, %v21, 0.0
    %v99 = vsel %vm91, %v22, 0.0
    %v100 = vmul.f32 %v92, %v96
    %v101 = vmul.f32 %v93, %v97
    %v102 = vmul.f32 %v94, %v98
    %v103 = vmul.f32 %v95, %v99
    %v104 = vadd.f32 %v100, %v101
    %v105 = vadd.f32 %v104, %v102
    %v106 = vadd.f32 %v105, %v103
    %107 = vst [vmem:[%s3] sm:$0xff] %v106
    %v108 = vmul.f32 %v92, 0.5
    %v109 = vmul.f32 %v93, 0.5
    %v110 = vmul.f32 %v94, 0.5
    %v111 = vmul.f32 %v95, 0.5
    %v112 = vmul.f32 %v96, 0.5
    %v113 = vmul.f32 %v97, 0.5
    %v114 = vmul.f32 %v98, 0.5
    %v115 = vmul.f32 %v99, 0.5
    %v116 = vadd.f32 %v108, %v112
    %v117 = vadd.f32 %v109, %v113
    %v118 = vadd.f32 %v110, %v114
    %v119 = vadd.f32 %v111, %v115
    %v120 = vadd.f32 %v116, %v117
    %v121 = vadd.f32 %v120, %v118
    %v122 = vadd.f32 %v121, %v119
    %123 = vst [vmem:[%s4] sm:$0xff] %v122
  $region17: #{focal_tversky_loss.1} parent=0 // pred_fallthru
    _
  // Predicated region
  $region18: #{focal_tversky_loss.1} parent=0 // pred_check
    _
  $region19: #{focal_tversky_loss.1} parent=0 // pred_check_branch
    %125 = sbr.rel (0) target = $region21
  $region20: #{focal_tversky_loss.1} parent=0 // pred_region
    _
  $region21: #{focal_tversky_loss.1} parent=0 // pred_fallthru
    _
  // Predicated region
  $region22: #{focal_tversky_loss.1} parent=0 // pred_check
    _
  $region23: #{focal_tversky_loss.1} parent=0 // pred_check_branch
    %127 = sbr.rel (0) target = $region25
  $region24: #{focal_tversky_loss.1} parent=0 // pred_region
    _
  $region25: #{focal_tversky_loss.1} parent=0 // pred_fallthru
    _
  // Predicated region
  $region26: #{focal_tversky_loss.1} parent=0 // pred_check
    _
  $region27: #{focal_tversky_loss.1} parent=0 // pred_check_branch
    %129 = sbr.rel (0) target = $region29
  $region28: #{focal_tversky_loss.1} parent=0 // pred_region
    _
  $region29: #{focal_tversky_loss.1} parent=0 // pred_fallthru
    _
  // Predicated region
  $region30: #{focal_tversky_loss.1} parent=0 // pred_check
    _
  $region31: #{focal_tversky_loss.1} parent=0 // pred_check_branch
    %131 = sbr.rel (0) target = $region33
  $region32: #{focal_tversky_loss.1} parent=0 // pred_region
    _
  $region33: #{focal_tversky_loss.1} parent=0 // pred_fallthru
    _

</llo_original>
